<compile_context>
chip_gen: v7x
topology: tpu7x:2x2x1
jax: 0.10.0
libtpu: 0.0.40
codegen_flags: <defaults>
</compile_context>

<pallas_src>
import jax
import jax.numpy as jnp
from jax.experimental import pallas as pl
from jax.experimental.pallas import tpu as pltpu


def _vmem_limit(nbytes):
    # Generous headroom for double buffering + intermediates; stays under v7x's 64 MiB.
    return int(min(60 * 2**20, max(16 * 2**20, 4 * nbytes)))


def _supports_z_kernel(e_ref, x_ref, z_ref):
    """Pass 1: supports + Chebyshev recursion on Z_k = T_k @ X (T_k never built)."""
    K = z_ref.shape[0]
    E = e_ref[...]                                    # [N, D]     f32
    X = x_ref[...]                                    # [N, B*Ci]  f32

    # supports = softmax(relu(E @ E^T), axis=1) -- kept in f32 for accuracy.
    a = jnp.dot(E, E.T, preferred_element_type=jnp.float32)        # [N, N]
    a = jnp.maximum(a, 0.0)
    a = a - jnp.max(a, axis=1, keepdims=True)
    ea = jnp.exp(a)
    inv = pl.reciprocal(jnp.sum(ea, axis=1, keepdims=True), approx=True)  # EUP slot
    supports = ea * inv                                             # [N, N] f32
    s_bf = supports.astype(jnp.bfloat16)                            # MXU operand

    # Z_0 = X  (T_0 = I -> no identity matmul)
    z_prev2 = X
    z_ref[0] = X.astype(z_ref.dtype)
    # Z_1 = supports @ X
    z_prev1 = jnp.dot(s_bf, X.astype(jnp.bfloat16),
                      preferred_element_type=jnp.float32)
    z_ref[1] = z_prev1.astype(z_ref.dtype)
    # Z_k = 2 * supports @ Z_{k-1} - Z_{k-2}
    for k in range(2, K):
        z_k = 2.0 * jnp.dot(s_bf, z_prev1.astype(jnp.bfloat16),
                            preferred_element_type=jnp.float32) - z_prev2
        z_ref[k] = z_k.astype(z_ref.dtype)
        z_prev2, z_prev1 = z_prev1, z_k


def _proj_kernel(xg_ref, e_ref, wp_ref, o_ref):
    """Pass 2: fused node-adaptive projection for one tile of nodes.

    xg_ref: [tn, B, K*Ci+1] f32   (last column == 1.0 -> bias term)
    e_ref : [tn, D]         f32
    wp_ref: [D, K*Ci+1, Co] bf16  (last "row" per d == bias_pool[d])
    o_ref : [tn, B*Co]            lane-dense output tile
    """
    tn, B, kcia = xg_ref.shape
    D = e_ref.shape[1]
    Co = wp_ref.shape[2]

    xg = xg_ref[...]                                  # f32 (elementwise stays f32)
    e = e_ref[...]                                    # f32

    acc = jnp.zeros((tn * B, Co), jnp.float32)
    for d in range(D):                                # static unroll; D is small
        ecol = e[:, d:d + 1][:, :, None]              # [tn, 1, 1]
        # scale the whole (B, K*Ci+1) slab of each node by E[n, d] (VPU), then one
        # big row-block matmul on the MXU: [tn*B, K*Ci+1] @ [K*Ci+1, Co].
        lhs = (xg * ecol).reshape(tn * B, kcia)       # collapse leading dims only
        acc = acc + jnp.dot(lhs.astype(jnp.bfloat16), wp_ref[d],
                            preferred_element_type=jnp.float32)

    # Lane-dense store: [tn*B, Co] -> [tn, B*Co].
    o_ref[...] = acc.reshape(tn, B * Co).astype(o_ref.dtype)


def _pick_node_tile(n):
    """Largest multiple-of-8 divisor of n (capped), preferring >=2 grid steps."""
    cands = [t for t in range(8, min(n, 256) + 1, 8) if n % t == 0]
    multi = [t for t in cands if n // t >= 2]
    if multi:
        return max(multi)
    if cands:
        return max(cands)
    return n  # fall back to a single whole-array tile (block == full dims)


def avwgcn_forward(x, node_embeddings, weights_pool, bias_pool):
    """x: [B, N, dim_in] -> [B, N, dim_out] (matches PyTorch AVWGCN.forward)."""
    B, N, Ci = x.shape
    D, K, _, Co = weights_pool.shape
    assert K >= 2, "cheb_k must be >= 2"

    # ---- layout plumbing (outside the kernels) -----------------------------
    x_t = jnp.transpose(x, (1, 0, 2)).reshape(N, B * Ci)          # node-major [N, B*Ci]

    # ---- pass 1: supports + Z recursion ------------------------------------
    p1_bytes = 4 * (N * D + N * B * Ci + N * N + K * N * B * Ci)
    zs = pl.pallas_call(
        _supports_z_kernel,
        out_shape=jax.ShapeDtypeStruct((K, N, B * Ci), jnp.float32),
        in_specs=[pl.BlockSpec(memory_space=pltpu.MemorySpace.VMEM)] * 2,
        out_specs=pl.BlockSpec(memory_space=pltpu.MemorySpace.VMEM),
        compiler_params=pltpu.CompilerParams(vmem_limit_bytes=_vmem_limit(p1_bytes)),
    )(node_embeddings, x_t)

    # zs[k, n, b*Ci+i] = (T_k @ x)[n, b, i]  ->  xg[n, b, k*Ci+i]  (plumbing only)
    xg = zs.reshape(K, N, B, Ci).transpose(1, 2, 0, 3).reshape(N, B, K * Ci)
    # append a ones column so the bias is folded into the projection matmuls
    xg_aug = jnp.concatenate([xg, jnp.ones((N, B, 1), xg.dtype)], axis=-1)
    kcia = K * Ci + 1

    # wpD[d, k*Ci+i, o] = weights_pool[d, k, i, o];  wpD[d, K*Ci, o] = bias_pool[d, o]
    wpD = jnp.concatenate(
        [weights_pool.reshape(D, K * Ci, Co), bias_pool[:, None, :]], axis=1
    ).astype(jnp.bfloat16)                                        # [D, K*Ci+1, Co]

    # ---- pass 2: gridded node-adaptive projection ---------------------------
    tn = _pick_node_tile(N)
    tile_bytes = 4 * (tn * B * kcia + tn * D + tn * B * Co) + 2 * D * kcia * Co
    out_flat = pl.pallas_call(
        _proj_kernel,
        out_shape=jax.ShapeDtypeStruct((N, B * Co), x.dtype),
        grid=(N // tn,),
        in_specs=[
            pl.BlockSpec((tn, B, kcia), lambda i: (i, 0, 0)),
            pl.BlockSpec((tn, D), lambda i: (i, 0)),
            pl.BlockSpec((D, kcia, Co), lambda i: (0, 0, 0)),     # resident weights
        ],
        out_specs=pl.BlockSpec((tn, B * Co), lambda i: (i, 0)),
        compiler_params=pltpu.CompilerParams(
            dimension_semantics=("parallel",),                     # dual-TC on v7x
            vmem_limit_bytes=_vmem_limit(tile_bytes),
        ),
    )(xg_aug, node_embeddings, wpD)

    return out_flat.reshape(N, B, Co).transpose(1, 0, 2)           # [B, N, Co]


def avwgcn_ref(x, E, wp, bp):
    """Pure-JAX reference mirroring the PyTorch forward exactly (f32)."""
    N = E.shape[0]
    K = wp.shape[1]
    supports = jax.nn.softmax(jax.nn.relu(E @ E.T), axis=1)
    ss = [jnp.eye(N, dtype=supports.dtype), supports]
    for _ in range(2, K):
        ss.append(2.0 * supports @ ss[-1] - ss[-2])
    S = jnp.stack(ss, axis=0)                                      # [K, N, N]
    W = jnp.einsum('nd,dkio->nkio', E, wp)                         # [N, K, Ci, Co]
    b = E @ bp                                                     # [N, Co]
    xg = jnp.einsum('knm,bmc->bknc', S, x).transpose(0, 2, 1, 3)   # [B, N, K, Ci]
    return jnp.einsum('bnki,nkio->bno', xg, W) + b


if __name__ == "__main__":
    B, N, dim_in, dim_out, cheb_k, embed_dim = 2, 16, 4, 8, 3, 8

    key = jax.random.PRNGKey(0)
    k1, k2, k3, k4 = jax.random.split(key, 4)
    x = jax.random.normal(k1, (B, N, dim_in), jnp.float32)
    node_embeddings = jax.random.normal(k2, (N, embed_dim), jnp.float32)
    # deterministic synthetic params (torch.FloatTensor in __init__ is uninitialized)
    weights_pool = 0.1 * jax.random.normal(
        k3, (embed_dim, cheb_k, dim_in, dim_out), jnp.float32
    )
    bias_pool = 0.1 * jax.random.normal(k4, (embed_dim, dim_out), jnp.float32)

    out = avwgcn_forward(x, node_embeddings, weights_pool, bias_pool)
    jax.block_until_ready(out)

    ref = avwgcn_ref(x, node_embeddings, weights_pool, bias_pool)
    assert out.shape == (B, N, dim_out)
    # bf16 MXU operands (f32 accumulation) -> looser tolerance than the pure-f32 path
    assert jnp.allclose(out, ref, atol=5e-2, rtol=5e-2), "mismatch vs JAX reference"
    print("KERNEL_OK")
</pallas_src>

<mosaic_0001>
module attributes {stable_mosaic.version = 11 : i64} {
  func.func @_supports_z_kernel(%arg0: memref<16x8xf32, #tpu.memory_space<vmem>>, %arg1: memref<16x8xf32, #tpu.memory_space<vmem>>, %arg2: memref<3x16x8xf32, #tpu.memory_space<vmem>>) attributes {dimension_semantics = [], scalar_prefetch = 0 : i64, scratch_operands = 0 : i64, tpu.core_type = #tpu.core_type<tc>} {
    %c0 = arith.constant 0 : index
    %c0_0 = arith.constant 0 : index
    %0 = vector.load %arg0[%c0, %c0_0] : memref<16x8xf32, #tpu.memory_space<vmem>>, vector<16x8xf32>
    %c0_1 = arith.constant 0 : index
    %c0_2 = arith.constant 0 : index
    %1 = vector.load %arg1[%c0_1, %c0_2] : memref<16x8xf32, #tpu.memory_space<vmem>>, vector<16x8xf32>
    %2 = tpu.transpose %0, [1, 0] : vector<16x8xf32> -> vector<8x16xf32>
    %cst = arith.constant dense<0.000000e+00> : vector<16x16xf32>
    %3 = tpu.matmul %0, %2, %cst {dimension_numbers = #tpu.dot_dimension_numbers<[1], [0], [0], [1], [0, 0, 1, 1], [], []>} : vector<16x8xf32>, vector<8x16xf32>, vector<16x16xf32> -> vector<16x16xf32>
    %cst_3 = arith.constant 0.000000e+00 : f32
    %4 = vector.broadcast %cst_3 : f32 to vector<16x16xf32>
    %5 = arith.maximumf %3, %4 : vector<16x16xf32>
    %cst_4 = arith.constant dense<0xFF800000> : vector<16xf32>
    %6 = vector.multi_reduction <maximumf>, %5, %cst_4 [1] : vector<16x16xf32> to vector<16xf32>
    %7 = vector.shape_cast %6 : vector<16xf32> to vector<16x1xf32>
    %8 = vector.broadcast %7 : vector<16x1xf32> to vector<16x16xf32>
    %9 = arith.subf %5, %8 : vector<16x16xf32>
    %10 = math.exp %9 : vector<16x16xf32>
    %cst_5 = arith.constant dense<0.000000e+00> : vector<16xf32>
    %11 = vector.multi_reduction <add>, %10, %cst_5 [1] : vector<16x16xf32> to vector<16xf32>
    %12 = vector.shape_cast %11 : vector<16xf32> to vector<16x1xf32>
    %13 = tpu.reciprocal %12 {approx = true} : vector<16x1xf32> -> vector<16x1xf32>
    %14 = vector.broadcast %13 : vector<16x1xf32> to vector<16x16xf32>
    %15 = arith.mulf %10, %14 : vector<16x16xf32>
    %16 = arith.truncf %15 : vector<16x16xf32> to vector<16x16xbf16>
    %c0_6 = arith.constant 0 : index
    %c0_7 = arith.constant 0 : index
    %c0_8 = arith.constant 0 : index
    %17 = vector.load %arg2[%c0_6, %c0_7, %c0_8] : memref<3x16x8xf32, #tpu.memory_space<vmem>>, vector<1x16x8xf32>
    %18 = vector.shape_cast %17 : vector<1x16x8xf32> to vector<16x8xf32>
    %19 = vector.shape_cast %1 : vector<16x8xf32> to vector<1x16x8xf32>
    tpu.vector_store %arg2[%c0_6, %c0_7, %c0_8], %19 {strides = array<i32>} : memref<3x16x8xf32, #tpu.memory_space<vmem>>, vector<1x16x8xf32>,
    %20 = arith.truncf %1 : vector<16x8xf32> to vector<16x8xbf16>
    %cst_9 = arith.constant dense<0.000000e+00> : vector<16x8xf32>
    %21 = tpu.matmul %16, %20, %cst_9 {dimension_numbers = #tpu.dot_dimension_numbers<[1], [0], [0], [1], [0, 0, 1, 1], [], []>} : vector<16x16xbf16>, vector<16x8xbf16>, vector<16x8xf32> -> vector<16x8xf32>
    %c1 = arith.constant 1 : index
    %c0_10 = arith.constant 0 : index
    %c0_11 = arith.constant 0 : index
    %22 = vector.load %arg2[%c1, %c0_10, %c0_11] : memref<3x16x8xf32, #tpu.memory_space<vmem>>, vector<1x16x8xf32>
    %23 = vector.shape_cast %22 : vector<1x16x8xf32> to vector<16x8xf32>
    %24 = vector.shape_cast %21 : vector<16x8xf32> to vector<1x16x8xf32>
    tpu.vector_store %arg2[%c1, %c0_10, %c0_11], %24 {strides = array<i32>} : memref<3x16x8xf32, #tpu.memory_space<vmem>>, vector<1x16x8xf32>,
    %25 = arith.truncf %21 : vector<16x8xf32> to vector<16x8xbf16>
    %cst_12 = arith.constant dense<0.000000e+00> : vector<16x8xf32>
    %26 = tpu.matmul %16, %25, %cst_12 {dimension_numbers = #tpu.dot_dimension_numbers<[1], [0], [0], [1], [0, 0, 1, 1], [], []>} : vector<16x16xbf16>, vector<16x8xbf16>, vector<16x8xf32> -> vector<16x8xf32>
    %cst_13 = arith.constant 2.000000e+00 : f32
    %27 = vector.broadcast %cst_13 : f32 to vector<16x8xf32>
    %28 = arith.mulf %27, %26 : vector<16x8xf32>
    %29 = arith.subf %28, %1 : vector<16x8xf32>
    %c2 = arith.constant 2 : index
    %c0_14 = arith.constant 0 : index
    %c0_15 = arith.constant 0 : index
    %30 = vector.load %arg2[%c2, %c0_14, %c0_15] : memref<3x16x8xf32, #tpu.memory_space<vmem>>, vector<1x16x8xf32>
    %31 = vector.shape_cast %30 : vector<1x16x8xf32> to vector<16x8xf32>
    %32 = vector.shape_cast %29 : vector<16x8xf32> to vector<1x16x8xf32>
    tpu.vector_store %arg2[%c2, %c0_14, %c0_15], %32 {strides = array<i32>} : memref<3x16x8xf32, #tpu.memory_space<vmem>>, vector<1x16x8xf32>,
    return
  }
}

</mosaic_0001>

<llo_original>
// kernel: tpu_custom_call.1
$region0: #{tpu_custom_call.1}
  #allocation0 [shape = 'u32[]', space=smem, size = 0x4, offset = 0x4, fixed_abs, tag = 'smem constant byte address 0x4 - core index']
  #allocation1 [shape = 'u32[144,128]{1,0:T(1,128)}', space=vmem, size = 0x12000, scoped, tag = 'internal scratch']
  %s0 = inlined_call_operand.vmem [shape: f32[16,8], index: 0, kind: input, shape index: {}]
  %s1 = inlined_call_operand.vmem [shape: f32[16,8], index: 1, kind: input, shape index: {}]
  %s2 = inlined_call_operand.vmem [shape: f32[3,16,8], index: 2, kind: output, shape index: {}]
  %s3 = sld [smem:[#allocation0]]
  $region18: #{tpu_custom_call.1} parent=0
    _
  %s5 = ssub.s32 1, %s3
  %s6 = scalar_select 0, %s5, %s3
  // Predicated region
  $region2: #{tpu_custom_call.1} parent=0 // pred_check
    _
  $region3: #{tpu_custom_call.1} parent=0 // pred_check_branch
    %8 = sbr.rel (0) target = $region5
  $region4: #{tpu_custom_call.1} parent=0 // pred_region
    _
  $region5: #{tpu_custom_call.1} parent=0 // pred_fallthru
    _
  // Predicated region
  $region6: #{tpu_custom_call.1} parent=0 // pred_check
    _
  $region7: #{tpu_custom_call.1} parent=0 // pred_check_branch
    %10 = sbr.rel (0) target = $region9
  $region8: #{tpu_custom_call.1} parent=0 // pred_region
    _
  $region9: #{tpu_custom_call.1} parent=0 // pred_fallthru
    _
  %v12 = vld [vmem:[%s0] sm:$0xff]
  %v13 = vld [vmem:[%s0 + $0x8] sm:$0xff]
  %v14 = vld [vmem:[%s1] sm:$0xff]
  %v15 = vld [vmem:[%s1 + $0x8] sm:$0xff]
  %vm16 = vcmask 64512
  %v18 = vsel %vm16, %v12, 0
  %v21 = vsel %vm16, %v13, 0
  %23 = vmatprep.subr.mxu0 0.0
  %24 = vmatpush1.xpose.msra.mxu0 %v18
  %25 = vmatprep.subr.mxu0 0.0
  %26 = vmatpush1.xpose.msra.mxu0 %v21
  %27 = vmatprep.subr.mxu0 0.0
  %28 = vmatpush1.xpose.msra.mxu0 0.0
  %29 = vmatprep.subr.mxu0 0.0
  %30 = vmatpush1.xpose.msra.mxu0 0.0
  %31 = vmatprep.subr.mxu0 0.0
  %32 = vmatpush1.xpose.msra.mxu0 0.0
  %33 = vmatprep.subr.mxu0 0.0
  %34 = vmatpush1.xpose.msra.mxu0 0.0
  %35 = vmatprep.subr.mxu0 0.0
  %36 = vmatpush1.xpose.msra.mxu0 0.0
  %37 = vmatprep.subr.mxu0 0.0
  %38 = vmatpush1.xpose.msra.mxu0 0.0
  %39 = vmatprep.subr.mxu0 0.0
  %40 = vmatpush1.xpose.msra.mxu0 0.0
  %41 = vmatprep.subr.mxu0 0.0
  %42 = vmatpush1.xpose.msra.mxu0 0.0
  %43 = vmatprep.subr.mxu0 0.0
  %44 = vmatpush1.xpose.msra.mxu0 0.0
  %45 = vmatprep.subr.mxu0 0.0
  %46 = vmatpush1.xpose.msra.mxu0 0.0
  %47 = vmatprep.subr.mxu0 0.0
  %48 = vmatpush1.xpose.msra.mxu0 0.0
  %49 = vmatprep.subr.mxu0 0.0
  %50 = vmatpush1.xpose.msra.mxu0 0.0
  %51 = vmatprep.subr.mxu0 0.0
  %52 = vmatpush1.xpose.msra.mxu0 0.0
  %53 = vmatprep.subr.mxu0 0.0
  %54 = vmatpush1.xpose.msra.mxu0 0.0
  %55 = vmatprep.subr.mxu0 0.0
  %56 = vmatpush1.xpose.msra.mxu0 0.0
  %57 = vmatprep.subr.mxu0 0.0
  %58 = vmatpush1.xpose.msra.mxu0 0.0
  %59 = vmatprep.subr.mxu0 0.0
  %60 = vmatpush1.xpose.msra.mxu0 0.0
  %61 = vmatprep.subr.mxu0 0.0
  %62 = vmatpush1.xpose.msra.mxu0 0.0
  %63 = vmatprep.subr.mxu0 0.0
  %64 = vmatpush1.xpose.msra.mxu0 0.0
  %65 = vmatprep.subr.mxu0 0.0
  %66 = vmatpush1.xpose.msra.mxu0 0.0
  %67 = vmatprep.subr.mxu0 0.0
  %68 = vmatpush1.xpose.msra.mxu0 0.0
  %69 = vmatprep.subr.mxu0 0.0
  %70 = vmatpush1.xpose.msra.mxu0 0.0
  %71 = vmatprep.subr.mxu0 0.0
  %72 = vmatpush1.xpose.msra.mxu0 0.0
  %73 = vmatprep.subr.mxu0 0.0
  %74 = vmatpush1.xpose.msra.mxu0 0.0
  %75 = vmatprep.subr.mxu0 0.0
  %76 = vmatpush1.xpose.msra.mxu0 0.0
  %77 = vmatprep.subr.mxu0 0.0
  %78 = vmatpush1.xpose.msra.mxu0 0.0
  %79 = vmatprep.subr.mxu0 0.0
  %80 = vmatpush1.xpose.msra.mxu0 0.0
  %81 = vmatprep.subr.mxu0 0.0
  %82 = vmatpush1.xpose.msra.mxu0 0.0
  %83 = vmatprep.subr.mxu0 0.0
  %84 = vmatpush1.xpose.msra.mxu0 0.0
  %85 = vmatprep.subr.mxu0 0.0
  %86 = vmatpush1.xpose.msra.mxu0 0.0
  %87 = vmatprep.mubr.f32.mxu0 0.0
  %88 = vmatmul.mubr.f32.gmra.mrb[0].mxu0 %v18
  %v89 = vpop.f32.mrb[0].mxu0
  %v90 = vadd.f32 0.0, %v89
  %v91 = vpop.f32.mrb[0].mxu0
  %92 = vmatprep.mubr.f32.mxu0 0.0
  %93 = vmatmul.mubr.f32.gmra.mrb[0].mxu0 %v21
  %v94 = vpop.f32.mrb[0].mxu0
  %v95 = vadd.f32 0.0, %v94
  %v96 = vpop.f32.mrb[0].mxu0
  %97 = vdwg.mxu0
  %v98 = vmax.f32 %v90, 0.0
  %v99 = vmax.f32 %v95, 0.0
  %vm100 = vcmask 130048
  %v101 = vsel %vm100, %v98, -inf
  %102 = vmax.xlane.f32.xlu0 %v101
  %v103 = vpop.xlane.xlu0 %102
  %v104 = vsel %vm100, %v99, -inf
  %105 = vmax.xlane.f32.xlu0 %v104
  %v106 = vpop.xlane.xlu0 %105
  %v107 = vsub.f32 %v98, %v103
  %v108 = vsub.f32 %v99, %v106
  %v109 = vmul.f32 %v107, 1.442695
  %v110 = vpow.pop %v109
  %v111 = vmul.f32 %v108, 1.442695
  %v112 = vpow.pop %v111
  %v113 = vsel %vm100, %v110, 0.0
  %114 = vadd.xlane.f32.xlu0 %v113
  %v115 = vpop.xlane.xlu0 %114
  %v116 = vsel %vm100, %v112, 0.0
  %117 = vadd.xlane.f32.xlu0 %v116
  %v118 = vpop.xlane.xlu0 %117
  %v119 = vrcp.pop %v115
  %v120 = vrcp.pop %v118
  %v121 = vmul.f32 %v110, %v119
  %v122 = vmul.f32 %v112, %v120
  %v123 = vpack.c.bf16 %v122, %v121
  %124 = vst.msk [vmem:[%s2] sm:$0xff] %vm16, %v14
  %125 = vst.msk [vmem:[%s2 + $0x8] sm:$0xff] %vm16, %v15
  %v126 = vpack.c.bf16 %v15, %v14
  %v128 = vsel %vm100, %v123, 0
  %130 = vmatprep.subr.bf16.mxu0 0
  %131 = vmatpush1.bf16.msra.mxu0 %v126
  %132 = vmatprep.subr.bf16.mxu0 0
  %133 = vmatpush1.bf16.msra.mxu0 0
  %134 = vmatprep.subr.bf16.mxu0 0
  %135 = vmatpush1.bf16.msra.mxu0 0
  %136 = vmatprep.subr.bf16.mxu0 0
  %137 = vmatpush1.bf16.msra.mxu0 0
  %138 = vmatprep.subr.bf16.mxu0 0
  %139 = vmatpush1.bf16.msra.mxu0 0
  %140 = vmatprep.subr.bf16.mxu0 0
  %141 = vmatpush1.bf16.msra.mxu0 0
  %142 = vmatprep.subr.bf16.mxu0 0
  %143 = vmatpush1.bf16.msra.mxu0 0
  %144 = vmatprep.subr.bf16.mxu0 0
  %145 = vmatpush1.bf16.msra.mxu0 0
  %146 = vmatprep.subr.bf16.mxu0 0
  %147 = vmatpush1.bf16.msra.mxu0 0
  %148 = vmatprep.subr.bf16.mxu0 0
  %149 = vmatpush1.bf16.msra.mxu0 0
  %150 = vmatprep.subr.bf16.mxu0 0
  %151 = vmatpush1.bf16.msra.mxu0 0
  %152 = vmatprep.subr.bf16.mxu0 0
  %153 = vmatpush1.bf16.msra.mxu0 0
  %154 = vmatprep.subr.bf16.mxu0 0
  %155 = vmatpush1.bf16.msra.mxu0 0
  %156 = vmatprep.subr.bf16.mxu0 0
  %157 = vmatpush1.bf16.msra.mxu0 0
  %158 = vmatprep.subr.bf16.mxu0 0
  %159 = vmatpush1.bf16.msra.mxu0 0
  %160 = vmatprep.subr.bf16.mxu0 0
  %161 = vmatpush1.bf16.msra.mxu0 0
  %162 = vmatprep.mubr.bf16.mxu0 0
  %163 = vmatmul.mubr.bf16.gmra.mrb[0].mxu0 %v128
  %v164 = vpop.f32.mrb[0].mxu0
  %v165 = vadd.f32 0.0, %v164
  %v166 = vpop.f32.mrb[0].mxu0
  %v167 = vpop.f32.mrb[0].mxu0
  %v168 = vadd.f32 0.0, %v167
  %v169 = vpop.f32.mrb[0].mxu0
  %170 = vdwg.mxu0
  %s171 = scalar_lea.vmem %s2, 16
  %172 = vst.msk [vmem:[%s171] sm:$0xff] %vm16, %v165
  %173 = vst.msk [vmem:[%s171 + $0x8] sm:$0xff] %vm16, %v168
  %v174 = vpack.c.bf16 %v168, %v165
  %175 = vmatprep.subr.bf16.mxu0 0
  %176 = vmatpush1.bf16.msra.mxu0 %v174
  %177 = vmatprep.subr.bf16.mxu0 0
  %178 = vmatpush1.bf16.msra.mxu0 0
  %179 = vmatprep.subr.bf16.mxu0 0
  %180 = vmatpush1.bf16.msra.mxu0 0
  %181 = vmatprep.subr.bf16.mxu0 0
  %182 = vmatpush1.bf16.msra.mxu0 0
  %183 = vmatprep.subr.bf16.mxu0 0
  %184 = vmatpush1.bf16.msra.mxu0 0
  %185 = vmatprep.subr.bf16.mxu0 0
  %186 = vmatpush1.bf16.msra.mxu0 0
  %187 = vmatprep.subr.bf16.mxu0 0
  %188 = vmatpush1.bf16.msra.mxu0 0
  %189 = vmatprep.subr.bf16.mxu0 0
  %190 = vmatpush1.bf16.msra.mxu0 0
  %191 = vmatprep.subr.bf16.mxu0 0
  %192 = vmatpush1.bf16.msra.mxu0 0
  %193 = vmatprep.subr.bf16.mxu0 0
  %194 = vmatpush1.bf16.msra.mxu0 0
  %195 = vmatprep.subr.bf16.mxu0 0
  %196 = vmatpush1.bf16.msra.mxu0 0
  %197 = vmatprep.subr.bf16.mxu0 0
  %198 = vmatpush1.bf16.msra.mxu0 0
  %199 = vmatprep.subr.bf16.mxu0 0
  %200 = vmatpush1.bf16.msra.mxu0 0
  %201 = vmatprep.subr.bf16.mxu0 0
  %202 = vmatpush1.bf16.msra.mxu0 0
  %203 = vmatprep.subr.bf16.mxu0 0
  %204 = vmatpush1.bf16.msra.mxu0 0
  %205 = vmatprep.subr.bf16.mxu0 0
  %206 = vmatpush1.bf16.msra.mxu0 0
  %207 = vmatprep.mubr.bf16.mxu0 0
  %208 = vmatmul.mubr.bf16.gmra.mrb[0].mxu0 %v128
  %v209 = vpop.f32.mrb[0].mxu0
  %v210 = vadd.f32 0.0, %v209
  %v211 = vpop.f32.mrb[0].mxu0
  %v212 = vpop.f32.mrb[0].mxu0
  %v213 = vadd.f32 0.0, %v212
  %v214 = vpop.f32.mrb[0].mxu0
  %215 = vdwg.mxu0
  %v216 = vmul.f32 %v210, 2.0
  %v217 = vmul.f32 %v213, 2.0
  %v218 = vsub.f32 %v216, %v14
  %v219 = vsub.f32 %v217, %v15
  %s220 = scalar_lea.vmem %s2, 32
  %221 = vst.msk [vmem:[%s220] sm:$0xff] %vm16, %v218
  %222 = vst.msk [vmem:[%s220 + $0x8] sm:$0xff] %vm16, %v219
  // Predicated region
  $region10: #{tpu_custom_call.1} parent=0 // pred_check
    _
  $region11: #{tpu_custom_call.1} parent=0 // pred_check_branch
    %224 = sbr.rel (0) target = $region13
  $region12: #{tpu_custom_call.1} parent=0 // pred_region
    _
  $region13: #{tpu_custom_call.1} parent=0 // pred_fallthru
    _
  // Predicated region
  $region14: #{tpu_custom_call.1} parent=0 // pred_check
    _
  $region15: #{tpu_custom_call.1} parent=0 // pred_check_branch
    %226 = sbr.rel (0) target = $region17
  $region16: #{tpu_custom_call.1} parent=0 // pred_region
    _
  $region17: #{tpu_custom_call.1} parent=0 // pred_fallthru
    _

</llo_original>
